<compile_context>
chip_gen: v7x
topology: tpu7x:2x2x1
jax: 0.10.0
libtpu: 0.0.40
codegen_flags: <defaults>
</compile_context>

<pallas_src>
import jax
import jax.numpy as jnp
from jax.experimental import pallas as pl
from jax.experimental.pallas import tpu as pltpu


_LANE = 128          # lane width: batch tiles are multiples of this
_TB_MAX = 16384      # max lanes per grid step (x tile 8x16384 f32 = 512 KiB, h1 = 4 MiB)
_SPLIT_MIN = 2048    # only split across TensorCores if each piece keeps >= this many lanes


def mlp_kernel(xT_ref, w1_ref, b1_ref, w2_ref, b2_ref, w3_ref, b3_ref, oT_ref):
    # Whole MLP fused; everything is lane-dense (batch lives on the lane axis).
    xT = xT_ref[...]                                                     # (8, tb)

    # Layer 1: (64, 8) @ (8, tb) -> (64, tb); f32 accumulation on the MXU.
    h1 = jnp.dot(w1_ref[...], xT, preferred_element_type=jnp.float32) + b1_ref[...]
    h1 = jnp.maximum(h1, 0.0)                                            # ReLU (f32, v5e-safe)

    # Layer 2: (32, 64) @ (64, tb) -> (32, tb).
    h2 = jnp.dot(w2_ref[...], h1.astype(w2_ref.dtype),
                 preferred_element_type=jnp.float32) + b2_ref[...]
    h2 = jnp.maximum(h2, 0.0)                                            # ReLU

    # Layer 3 (32 -> 1): VPU multiply + sublane reduce (XLU is otherwise idle here);
    # result stays lane-dense (1, tb).  b3 is a scalar read from SMEM.
    out = jnp.sum(w3_ref[...] * h2, axis=0, keepdims=True) + b3_ref[0]   # (1, tb)
    oT_ref[...] = out.astype(oT_ref.dtype)


def _round_up(n, m):
    return ((n + m - 1) // m) * m


def _num_tensorcores():
    """Best-effort: chips whose single JAX device spans 2 TensorCores (v4/v5p megacore, v7x)."""
    try:
        kind = jax.devices()[0].device_kind.lower()
    except Exception:
        return 1
    return 2 if any(tag in kind for tag in ("v4", "v5p", "v7")) else 1


def _choose_tile(batch, n_cores):
    """Lane-dense tile (multiple of 128). Single grid step unless the batch exceeds one
    large tile, or the chip has 2 TensorCores and each half still gets >= 2048 lanes."""
    b_pad = _round_up(batch, _LANE)
    n_steps = -(-b_pad // _TB_MAX)
    if n_steps == 1 and n_cores >= 2 and b_pad >= 2 * _SPLIT_MIN:
        n_steps = 2                                   # feed both TensorCores (v7x / megacore)
    tb = _round_up(-(-b_pad // n_steps), _LANE)
    return tb, tb * n_steps


def _forward_impl(x, params, *, use_bf16=True):
    """x: (B, 8). params: PyTorch-layout weights (see init_params). Returns (B, 1) float32."""
    w1, b1, w2, b2, w3, b3 = (params[k] for k in ("w1", "b1", "w2", "b2", "w3", "b3"))
    B, F = x.shape
    assert F == 8, "RegressionModel expects 8 input features"

    tb, B_pad = _choose_tile(B, _num_tensorcores())

    compute_dtype = jnp.bfloat16 if use_bf16 else jnp.float32
    # Single fused wrapper pass over x: under jit the transpose + cast (+ pad, only when
    # B is not lane-aligned) fuse into one XLA copy.  The kernel then streams lane-dense
    # (8, tb) tiles with fully contiguous, unmasked DMAs and no VMEM lane padding.
    xT = x.T.astype(compute_dtype)                                       # (8, B)
    if B_pad != B:
        xT = jnp.pad(xT, ((0, 0), (0, B_pad - B)))

    w1c = w1.astype(compute_dtype)
    w2c = w2.astype(compute_dtype)
    # w3 / biases stay f32: layer 3 and all VPU math run in f32 (v5e has no bf16 VPU).

    rep = lambda shape: pl.BlockSpec(shape, lambda i: (0, 0))            # replicated small tensors

    outT = pl.pallas_call(
        mlp_kernel,
        out_shape=jax.ShapeDtypeStruct((1, B_pad), jnp.float32),
        grid_spec=pltpu.PrefetchScalarGridSpec(
            num_scalar_prefetch=0,
            grid=(B_pad // tb,),
            in_specs=[
                pl.BlockSpec((8, tb), lambda i: (0, i)),                 # x^T tile, lane-dense
                rep(w1c.shape), rep(b1.shape),                           # (64,8), (64,1)
                rep(w2c.shape), rep(b2.shape),                           # (32,64), (32,1)
                rep(w3.shape),                                           # (32,1) column for VPU reduce
                pl.BlockSpec((1,), lambda i: (0,),                       # b3 scalar in SMEM
                             memory_space=pltpu.MemorySpace.SMEM),
            ],
            out_specs=pl.BlockSpec((1, tb), lambda i: (0, i)),           # lane-dense output slab
        ),
        compiler_params=pltpu.CompilerParams(
            dimension_semantics=("parallel",),
            vmem_limit_bytes=40 * 1024 * 1024,
        ),
    )(xT, w1c, b1, w2c, b2, w3, b3)

    # (1, B_pad) -> (B, 1); padded lanes dropped.
    return outT[0, :B].reshape(B, 1)


# Jitted entry point: guarantees the wrapper-side transpose/cast/pad fuse into one pass
# and the whole forward runs as a single XLA program.
regression_model_forward = jax.jit(_forward_impl, static_argnames=("use_bf16",))


def init_params(key):
    """Deterministic init, PyTorch nn.Linear layout: W (out, in), bias per output."""
    k1, k2, k3 = jax.random.split(key, 3)

    def linear(k, fan_in, fan_out):
        bound = 1.0 / jnp.sqrt(fan_in)
        kw, kb = jax.random.split(k)
        w = jax.random.uniform(kw, (fan_out, fan_in), jnp.float32, -bound, bound)
        b = jax.random.uniform(kb, (fan_out, 1), jnp.float32, -bound, bound)
        return w, b

    w1, b1 = linear(k1, 8, 64)     # (64, 8), (64, 1)
    w2, b2 = linear(k2, 64, 32)    # (32, 64), (32, 1)
    w3_row, b3_col = linear(k3, 32, 1)
    w3 = w3_row.T                  # (32, 1) column — layer 3 is a weighted sublane reduce
    b3 = b3_col.reshape(1)         # (1,) scalar, lives in SMEM
    return {"w1": w1, "b1": b1, "w2": w2, "b2": b2, "w3": w3, "b3": b3}


def _reference(x, params):
    h1 = jnp.maximum(x @ params["w1"].T + params["b1"].T, 0.0)
    h2 = jnp.maximum(h1 @ params["w2"].T + params["b2"].T, 0.0)
    return h2 @ params["w3"] + params["b3"]


if __name__ == "__main__":
    key = jax.random.PRNGKey(0)
    kx, kx2, kp = jax.random.split(key, 3)
    params = init_params(kp)

    # Small batch (pads up to one 128-lane tile), f32 path, tight tolerance.
    x_small = jax.random.normal(kx, (8, 8), dtype=jnp.float32)
    out_small = jax.block_until_ready(regression_model_forward(x_small, params, use_bf16=False))
    ref_small = _reference(x_small, params)
    assert out_small.shape == (8, 1)
    assert jnp.allclose(out_small, ref_small, atol=1e-5, rtol=1e-5), "f32 small-batch mismatch"

    # Larger batch, f32 path: single lane-dense tile (no gratuitous grid splitting).
    x_big = jax.random.normal(kx2, (512, 8), dtype=jnp.float32)
    out_big = jax.block_until_ready(regression_model_forward(x_big, params, use_bf16=False))
    ref_big = _reference(x_big, params)
    assert out_big.shape == (512, 1)
    assert jnp.allclose(out_big, ref_big, atol=1e-5, rtol=1e-5), "f32 large-batch mismatch"

    # Default path: bf16 x/W1/W2 storage + MXU inputs, f32 accumulation — looser tolerance.
    out_bf16 = jax.block_until_ready(regression_model_forward(x_big, params))
    assert jnp.allclose(out_bf16, ref_big, atol=3e-2, rtol=3e-2), "bf16 path mismatch"

    print("KERNEL_OK")
</pallas_src>

<mosaic_0001>
module attributes {stable_mosaic.version = 11 : i64} {
  func.func @mlp_kernel(%arg0: i32, %arg1: memref<8x128xf32, #tpu.memory_space<vmem>>, %arg2: memref<64x8xf32, #tpu.memory_space<vmem>>, %arg3: memref<64x1xf32, #tpu.memory_space<vmem>>, %arg4: memref<32x64xf32, #tpu.memory_space<vmem>>, %arg5: memref<32x1xf32, #tpu.memory_space<vmem>>, %arg6: memref<32x1xf32, #tpu.memory_space<vmem>>, %arg7: memref<1xf32, #tpu.memory_space<smem>>, %arg8: memref<1x128xf32, #tpu.memory_space<vmem>>) attributes {dimension_semantics = [#tpu.dimension_semantics<parallel>], iteration_bounds = array<i64: 1>, scalar_prefetch = 0 : i64, scratch_operands = 0 : i64, tpu.core_type = #tpu.core_type<tc>, window_params = [{transform_indices = @transform_0, window_bounds = array<i64: 8, 128>}, {pipeline_mode = #tpu.pipeline_mode<synchronous>, transform_indices = @transform_1, window_bounds = array<i64: 64, 8>}, {pipeline_mode = #tpu.pipeline_mode<synchronous>, transform_indices = @transform_2, window_bounds = array<i64: 64, 1>}, {pipeline_mode = #tpu.pipeline_mode<synchronous>, transform_indices = @transform_3, window_bounds = array<i64: 32, 64>}, {pipeline_mode = #tpu.pipeline_mode<synchronous>, transform_indices = @transform_4, window_bounds = array<i64: 32, 1>}, {pipeline_mode = #tpu.pipeline_mode<synchronous>, transform_indices = @transform_5, window_bounds = array<i64: 32, 1>}, {transform_indices = @transform_6, window_bounds = array<i64: 1>}, {transform_indices = @transform_7, window_bounds = array<i64: 1, 128>}]} {
    %c0 = arith.constant 0 : index
    %c0_0 = arith.constant 0 : index
    %0 = vector.load %arg1[%c0, %c0_0] : memref<8x128xf32, #tpu.memory_space<vmem>>, vector<8x128xf32>
    %c0_1 = arith.constant 0 : index
    %c0_2 = arith.constant 0 : index
    %1 = vector.load %arg2[%c0_1, %c0_2] : memref<64x8xf32, #tpu.memory_space<vmem>>, vector<64x8xf32>
    %cst = arith.constant dense<0.000000e+00> : vector<64x128xf32>
    %2 = tpu.matmul %1, %0, %cst {dimension_numbers = #tpu.dot_dimension_numbers<[1], [0], [0], [1], [0, 0, 1, 1], [], []>} : vector<64x8xf32>, vector<8x128xf32>, vector<64x128xf32> -> vector<64x128xf32>
    %c0_3 = arith.constant 0 : index
    %c0_4 = arith.constant 0 : index
    %3 = vector.load %arg3[%c0_3, %c0_4] : memref<64x1xf32, #tpu.memory_space<vmem>>, vector<64x1xf32>
    %4 = vector.broadcast %3 : vector<64x1xf32> to vector<64x128xf32>
    %5 = arith.addf %2, %4 : vector<64x128xf32>
    %cst_5 = arith.constant 0.000000e+00 : f32
    %6 = vector.broadcast %cst_5 : f32 to vector<64x128xf32>
    %7 = arith.maximumf %5, %6 : vector<64x128xf32>
    %c0_6 = arith.constant 0 : index
    %c0_7 = arith.constant 0 : index
    %8 = vector.load %arg4[%c0_6, %c0_7] : memref<32x64xf32, #tpu.memory_space<vmem>>, vector<32x64xf32>
    %cst_8 = arith.constant dense<0.000000e+00> : vector<32x128xf32>
    %9 = tpu.matmul %8, %7, %cst_8 {dimension_numbers = #tpu.dot_dimension_numbers<[1], [0], [0], [1], [0, 0, 1, 1], [], []>} : vector<32x64xf32>, vector<64x128xf32>, vector<32x128xf32> -> vector<32x128xf32>
    %c0_9 = arith.constant 0 : index
    %c0_10 = arith.constant 0 : index
    %10 = vector.load %arg5[%c0_9, %c0_10] : memref<32x1xf32, #tpu.memory_space<vmem>>, vector<32x1xf32>
    %11 = vector.broadcast %10 : vector<32x1xf32> to vector<32x128xf32>
    %12 = arith.addf %9, %11 : vector<32x128xf32>
    %cst_11 = arith.constant 0.000000e+00 : f32
    %13 = vector.broadcast %cst_11 : f32 to vector<32x128xf32>
    %14 = arith.maximumf %12, %13 : vector<32x128xf32>
    %c0_12 = arith.constant 0 : index
    %c0_13 = arith.constant 0 : index
    %15 = vector.load %arg6[%c0_12, %c0_13] : memref<32x1xf32, #tpu.memory_space<vmem>>, vector<32x1xf32>
    %16 = vector.broadcast %15 : vector<32x1xf32> to vector<32x128xf32>
    %17 = arith.mulf %16, %14 : vector<32x128xf32>
    %cst_14 = arith.constant dense<0.000000e+00> : vector<128xf32>
    %18 = vector.multi_reduction <add>, %17, %cst_14 [0] : vector<32x128xf32> to vector<128xf32>
    %19 = vector.shape_cast %18 : vector<128xf32> to vector<1x128xf32>
    %c0_15 = arith.constant 0 : index
    %20 = memref.load %arg7[%c0_15] : memref<1xf32, #tpu.memory_space<smem>>
    %21 = vector.broadcast %20 : f32 to vector<1x128xf32>
    %22 = arith.addf %19, %21 : vector<1x128xf32>
    %c0_16 = arith.constant 0 : index
    %c0_17 = arith.constant 0 : index
    %23 = vector.load %arg8[%c0_16, %c0_17] : memref<1x128xf32, #tpu.memory_space<vmem>>, vector<1x128xf32>
    tpu.vector_store %arg8[%c0_16, %c0_17], %22 {strides = array<i32>} : memref<1x128xf32, #tpu.memory_space<vmem>>, vector<1x128xf32>,
    return
  }
  func.func @transform_0(%arg0: i32) -> (i32, i32) {
    %c0_i32 = arith.constant 0 : i32
    %c0_i32_0 = arith.constant 0 : i32
    return %c0_i32, %arg0 : i32, i32
  }
  func.func @transform_1(%arg0: i32) -> (i32, i32) {
    %c0_i32 = arith.constant 0 : i32
    %c0_i32_0 = arith.constant 0 : i32
    %c0_i32_1 = arith.constant 0 : i32
    return %c0_i32, %c0_i32_0 : i32, i32
  }
  func.func @transform_2(%arg0: i32) -> (i32, i32) {
    %c0_i32 = arith.constant 0 : i32
    %c0_i32_0 = arith.constant 0 : i32
    %c0_i32_1 = arith.constant 0 : i32
    return %c0_i32, %c0_i32_0 : i32, i32
  }
  func.func @transform_3(%arg0: i32) -> (i32, i32) {
    %c0_i32 = arith.constant 0 : i32
    %c0_i32_0 = arith.constant 0 : i32
    %c0_i32_1 = arith.constant 0 : i32
    return %c0_i32, %c0_i32_0 : i32, i32
  }
  func.func @transform_4(%arg0: i32) -> (i32, i32) {
    %c0_i32 = arith.constant 0 : i32
    %c0_i32_0 = arith.constant 0 : i32
    %c0_i32_1 = arith.constant 0 : i32
    return %c0_i32, %c0_i32_0 : i32, i32
  }
  func.func @transform_5(%arg0: i32) -> (i32, i32) {
    %c0_i32 = arith.constant 0 : i32
    %c0_i32_0 = arith.constant 0 : i32
    %c0_i32_1 = arith.constant 0 : i32
    return %c0_i32, %c0_i32_0 : i32, i32
  }
  func.func @transform_6(%arg0: i32) -> i32 {
    %c0_i32 = arith.constant 0 : i32
    %c0_i32_0 = arith.constant 0 : i32
    return %c0_i32 : i32
  }
  func.func @transform_7(%arg0: i32) -> (i32, i32) {
    %c0_i32 = arith.constant 0 : i32
    %c0_i32_0 = arith.constant 0 : i32
    return %c0_i32, %arg0 : i32, i32
  }
}

</mosaic_0001>

<llo_original>
// kernel: _forward_impl.1
$region0: #{_forward_impl.1}
  #allocation0 [shape = 'u32[]', space=smem, size = 0x4, offset = 0x4, fixed_abs, tag = 'smem constant byte address 0x4 - core index']
  #allocation1 [shape = 'u32[144,128]{1,0:T(1,128)}', space=vmem, size = 0x12000, scoped, tag = 'internal scratch']
  #allocation2 [shape = 'f32[1]{0:T(128)S(6)}', space=smem, size = 0x200, scoped, tag = 'scoped memory for _forward_impl.1']
  %s0 = inlined_call_operand.vmem [shape: f32[8,128], index: 0, kind: input, shape index: {}]
  %s1 = inlined_call_operand.vmem [shape: f32[64,8], index: 1, kind: input, shape index: {}]
  %s2 = inlined_call_operand.vmem [shape: f32[64,1], index: 2, kind: input, shape index: {}]
  %s3 = inlined_call_operand.vmem [shape: f32[32,64], index: 3, kind: input, shape index: {}]
  %s4 = inlined_call_operand.vmem [shape: f32[32,1], index: 4, kind: input, shape index: {}]
  %s5 = inlined_call_operand.vmem [shape: f32[32,1], index: 5, kind: input, shape index: {}]
  %s6 = inlined_call_operand.<no memory space> [shape: f32[1], index: 6, kind: input, shape index: {}]
  %s7 = inlined_call_operand.vmem [shape: f32[1,128], index: 7, kind: output, shape index: {}]
  %s8 = sld [smem:[#allocation0]]
  $region38: #{_forward_impl.1} parent=0
    _
  %s10 = ssub.s32 1, %s8
  %s11 = scalar_select 0, %s10, %s8
  %12 = sst [smem:[#allocation2]] %s6
  // Predicated region
  $region2: #{_forward_impl.1} parent=0 // pred_check
    _
  $region3: #{_forward_impl.1} parent=0 // pred_check_branch
    %14 = sbr.rel (0) target = $region5
  $region4: #{_forward_impl.1} parent=0 // pred_region
    _
  $region5: #{_forward_impl.1} parent=0 // pred_fallthru
    _
  // Predicated region
  $region6: #{_forward_impl.1} parent=0 // pred_check
    _
  $region7: #{_forward_impl.1} parent=0 // pred_check_branch
    %16 = sbr.rel (0) target = $region9
  $region8: #{_forward_impl.1} parent=0 // pred_region
    _
  $region9: #{_forward_impl.1} parent=0 // pred_fallthru
    _
  // Predicated region
  $region10: #{_forward_impl.1} parent=0 // pred_check
    _
  $region11: #{_forward_impl.1} parent=0 // pred_check_branch
    %18 = sbr.rel (0) target = $region13
  $region12: #{_forward_impl.1} parent=0 // pred_region
    _
  $region13: #{_forward_impl.1} parent=0 // pred_fallthru
    _
  // Predicated region
  $region14: #{_forward_impl.1} parent=0 // pred_check
    _
  $region15: #{_forward_impl.1} parent=0 // pred_check_branch
    %20 = sbr.rel (0) target = $region17
  $region16: #{_forward_impl.1} parent=0 // pred_region
    _
  $region17: #{_forward_impl.1} parent=0 // pred_fallthru
    _
  // Predicated region
  $region18: #{_forward_impl.1} parent=0 // pred_check
    _
  $region19: #{_forward_impl.1} parent=0 // pred_check_branch
    %22 = sbr.rel (0) target = $region21
  $region20: #{_forward_impl.1} parent=0 // pred_region
    _
  $region21: #{_forward_impl.1} parent=0 // pred_fallthru
    _
  // Predicated region
  $region22: #{_forward_impl.1} parent=0 // pred_check
    _
  $region23: #{_forward_impl.1} parent=0 // pred_check_branch
    %24 = sbr.rel (0) target = $region25
  $region24: #{_forward_impl.1} parent=0 // pred_region
    _
  $region25: #{_forward_impl.1} parent=0 // pred_fallthru
    _
  // Predicated region
  $region26: #{_forward_impl.1} parent=0 // pred_check
    _
  $region27: #{_forward_impl.1} parent=0 // pred_check_branch
    %26 = sbr.rel (0) target = $region29
  $region28: #{_forward_impl.1} parent=0 // pred_region
    _
  $region29: #{_forward_impl.1} parent=0 // pred_fallthru
    _
  %v27 = vld [vmem:[%s0] sm:$0xff]
  %v28 = vld [vmem:[%s1] sm:$0xff]
  %v29 = vld [vmem:[%s1 + $0x8] sm:$0xff]
  %v30 = vld [vmem:[%s1 + $0x10] sm:$0xff]
  %v31 = vld [vmem:[%s1 + $0x18] sm:$0xff]
  %v32 = vld [vmem:[%s1 + $0x20] sm:$0xff]
  %v33 = vld [vmem:[%s1 + $0x28] sm:$0xff]
  %v34 = vld [vmem:[%s1 + $0x30] sm:$0xff]
  %v35 = vld [vmem:[%s1 + $0x38] sm:$0xff]
  %v36 = vld [vmem:[%s2] sm:$0xff]
  %v37 = vld [vmem:[%s2 + $0x8] sm:$0xff]
  %v38 = vld [vmem:[%s2 + $0x10] sm:$0xff]
  %v39 = vld [vmem:[%s2 + $0x18] sm:$0xff]
  %v40 = vld [vmem:[%s2 + $0x20] sm:$0xff]
  %v41 = vld [vmem:[%s2 + $0x28] sm:$0xff]
  %v42 = vld [vmem:[%s2 + $0x30] sm:$0xff]
  %v43 = vld [vmem:[%s2 + $0x38] sm:$0xff]
  %45 = vset.pattern.permute.xlu0 0
  %46 = vperm.xlu0 %45, %v36
  %v47 = vpop.permute.xlu0 %46
  %50 = vset.pattern.permute.xlu0 0
  %51 = vperm.xlu0 %50, %v37
  %v52 = vpop.permute.xlu0 %51
  %55 = vset.pattern.permute.xlu0 0
  %56 = vperm.xlu0 %55, %v38
  %v57 = vpop.permute.xlu0 %56
  %60 = vset.pattern.permute.xlu0 0
  %61 = vperm.xlu0 %60, %v39
  %v62 = vpop.permute.xlu0 %61
  %65 = vset.pattern.permute.xlu0 0
  %66 = vperm.xlu0 %65, %v40
  %v67 = vpop.permute.xlu0 %66
  %70 = vset.pattern.permute.xlu0 0
  %71 = vperm.xlu0 %70, %v41
  %v72 = vpop.permute.xlu0 %71
  %75 = vset.pattern.permute.xlu0 0
  %76 = vperm.xlu0 %75, %v42
  %v77 = vpop.permute.xlu0 %76
  %80 = vset.pattern.permute.xlu0 0
  %81 = vperm.xlu0 %80, %v43
  %v82 = vpop.permute.xlu0 %81
  %vm84 = vcmask 64512
  %v86 = vsel %vm84, %v28, 0
  %v89 = vsel %vm84, %v29, 0
  %v92 = vsel %vm84, %v30, 0
  %v95 = vsel %vm84, %v31, 0
  %v98 = vsel %vm84, %v32, 0
  %v101 = vsel %vm84, %v33, 0
  %v104 = vsel %vm84, %v34, 0
  %v107 = vsel %vm84, %v35, 0
  %109 = vmatprep.subr.mxu0 0.0
  %110 = vmatpush1.msra.mxu0 %v27
  %111 = vmatprep.subr.mxu0 0.0
  %112 = vmatpush1.msra.mxu0 0.0
  %113 = vmatprep.subr.mxu0 0.0
  %114 = vmatpush1.msra.mxu0 0.0
  %115 = vmatprep.subr.mxu0 0.0
  %116 = vmatpush1.msra.mxu0 0.0
  %117 = vmatprep.subr.mxu0 0.0
  %118 = vmatpush1.msra.mxu0 0.0
  %119 = vmatprep.subr.mxu0 0.0
  %120 = vmatpush1.msra.mxu0 0.0
  %121 = vmatprep.subr.mxu0 0.0
  %122 = vmatpush1.msra.mxu0 0.0
  %123 = vmatprep.subr.mxu0 0.0
  %124 = vmatpush1.msra.mxu0 0.0
  %125 = vmatprep.subr.mxu0 0.0
  %126 = vmatpush1.msra.mxu0 0.0
  %127 = vmatprep.subr.mxu0 0.0
  %128 = vmatpush1.msra.mxu0 0.0
  %129 = vmatprep.subr.mxu0 0.0
  %130 = vmatpush1.msra.mxu0 0.0
  %131 = vmatprep.subr.mxu0 0.0
  %132 = vmatpush1.msra.mxu0 0.0
  %133 = vmatprep.subr.mxu0 0.0
  %134 = vmatpush1.msra.mxu0 0.0
  %135 = vmatprep.subr.mxu0 0.0
  %136 = vmatpush1.msra.mxu0 0.0
  %137 = vmatprep.subr.mxu0 0.0
  %138 = vmatpush1.msra.mxu0 0.0
  %139 = vmatprep.subr.mxu0 0.0
  %140 = vmatpush1.msra.mxu0 0.0
  %141 = vmatprep.subr.mxu0 0.0
  %142 = vmatpush1.msra.mxu0 0.0
  %143 = vmatprep.subr.mxu0 0.0
  %144 = vmatpush1.msra.mxu0 0.0
  %145 = vmatprep.subr.mxu0 0.0
  %146 = vmatpush1.msra.mxu0 0.0
  %147 = vmatprep.subr.mxu0 0.0
  %148 = vmatpush1.msra.mxu0 0.0
  %149 = vmatprep.subr.mxu0 0.0
  %150 = vmatpush1.msra.mxu0 0.0
  %151 = vmatprep.subr.mxu0 0.0
  %152 = vmatpush1.msra.mxu0 0.0
  %153 = vmatprep.subr.mxu0 0.0
  %154 = vmatpush1.msra.mxu0 0.0
  %155 = vmatprep.subr.mxu0 0.0
  %156 = vmatpush1.msra.mxu0 0.0
  %157 = vmatprep.subr.mxu0 0.0
  %158 = vmatpush1.msra.mxu0 0.0
  %159 = vmatprep.subr.mxu0 0.0
  %160 = vmatpush1.msra.mxu0 0.0
  %161 = vmatprep.subr.mxu0 0.0
  %162 = vmatpush1.msra.mxu0 0.0
  %163 = vmatprep.subr.mxu0 0.0
  %164 = vmatpush1.msra.mxu0 0.0
  %165 = vmatprep.subr.mxu0 0.0
  %166 = vmatpush1.msra.mxu0 0.0
  %167 = vmatprep.subr.mxu0 0.0
  %168 = vmatpush1.msra.mxu0 0.0
  %169 = vmatprep.subr.mxu0 0.0
  %170 = vmatpush1.msra.mxu0 0.0
  %171 = vmatprep.subr.mxu0 0.0
  %172 = vmatpush1.msra.mxu0 0.0
  %173 = vmatprep.mubr.f32.mxu0 0.0
  %174 = vmatmul.mubr.f32.gmra.mrb[0].mxu0 %v86
  %v175 = vpop.f32.mrb[0].mxu0
  %v176 = vadd.f32 %v47, %v175
  %v177 = vpop.f32.mrb[0].mxu0
  %178 = vmatprep.mubr.f32.mxu0 0.0
  %179 = vmatmul.mubr.f32.gmra.mrb[0].mxu0 %v89
  %v180 = vpop.f32.mrb[0].mxu0
  %v181 = vadd.f32 %v52, %v180
  %v182 = vpop.f32.mrb[0].mxu0
  %183 = vmatprep.mubr.f32.mxu0 0.0
  %184 = vmatmul.mubr.f32.gmra.mrb[0].mxu0 %v92
  %v185 = vpop.f32.mrb[0].mxu0
  %v186 = vadd.f32 %v57, %v185
  %v187 = vpop.f32.mrb[0].mxu0
  %188 = vmatprep.mubr.f32.mxu0 0.0
  %189 = vmatmul.mubr.f32.gmra.mrb[0].mxu0 %v95
  %v190 = vpop.f32.mrb[0].mxu0
  %v191 = vadd.f32 %v62, %v190
  %v192 = vpop.f32.mrb[0].mxu0
  %193 = vmatprep.mubr.f32.mxu0 0.0
  %194 = vmatmul.mubr.f32.gmra.mrb[0].mxu0 %v98
  %v195 = vpop.f32.mrb[0].mxu0
  %v196 = vadd.f32 %v67, %v195
  %v197 = vpop.f32.mrb[0].mxu0
  %198 = vmatprep.mubr.f32.mxu0 0.0
  %199 = vmatmul.mubr.f32.gmra.mrb[0].mxu0 %v101
  %v200 = vpop.f32.mrb[0].mxu0
  %v201 = vadd.f32 %v72, %v200
  %v202 = vpop.f32.mrb[0].mxu0
  %203 = vmatprep.mubr.f32.mxu0 0.0
  %204 = vmatmul.mubr.f32.gmra.mrb[0].mxu0 %v104
  %v205 = vpop.f32.mrb[0].mxu0
  %v206 = vadd.f32 %v77, %v205
  %v207 = vpop.f32.mrb[0].mxu0
  %208 = vmatprep.mubr.f32.mxu0 0.0
  %209 = vmatmul.mubr.f32.gmra.mrb[0].mxu0 %v107
  %v210 = vpop.f32.mrb[0].mxu0
  %v211 = vadd.f32 %v82, %v210
  %v212 = vpop.f32.mrb[0].mxu0
  %213 = vdwg.mxu0
  %v214 = vmax.f32 %v176, 0.0
  %v215 = vmax.f32 %v181, 0.0
  %v216 = vmax.f32 %v186, 0.0
  %v217 = vmax.f32 %v191, 0.0
  %v218 = vmax.f32 %v196, 0.0
  %v219 = vmax.f32 %v201, 0.0
  %v220 = vmax.f32 %v206, 0.0
  %v221 = vmax.f32 %v211, 0.0
  %v222 = vld [vmem:[%s3] sm:$0xff]
  %v223 = vld [vmem:[%s3 + $0x8] sm:$0xff]
  %v224 = vld [vmem:[%s3 + $0x10] sm:$0xff]
  %v225 = vld [vmem:[%s3 + $0x18] sm:$0xff]
  %v226 = vld [vmem:[%s4] sm:$0xff]
  %v227 = vld [vmem:[%s4 + $0x8] sm:$0xff]
  %v228 = vld [vmem:[%s4 + $0x10] sm:$0xff]
  %v229 = vld [vmem:[%s4 + $0x18] sm:$0xff]
  %231 = vset.pattern.permute.xlu0 0
  %232 = vperm.xlu0 %231, %v226
  %v233 = vpop.permute.xlu0 %232
  %236 = vset.pattern.permute.xlu0 0
  %237 = vperm.xlu0 %236, %v227
  %v238 = vpop.permute.xlu0 %237
  %241 = vset.pattern.permute.xlu0 0
  %242 = vperm.xlu0 %241, %v228
  %v243 = vpop.permute.xlu0 %242
  %246 = vset.pattern.permute.xlu0 0
  %247 = vperm.xlu0 %246, %v229
  %v248 = vpop.permute.xlu0 %247
  %vm250 = vcmask 523264
  %v252 = vsel %vm250, %v222, 0
  %v255 = vsel %vm250, %v223, 0
  %v258 = vsel %vm250, %v224, 0
  %v261 = vsel %vm250, %v225, 0
  %263 = vmatprep.subr.mxu0 0.0
  %264 = vmatpush1.msra.mxu0 %v214
  %265 = vmatprep.subr.mxu0 0.0
  %266 = vmatpush1.msra.mxu0 %v215
  %267 = vmatprep.subr.mxu0 0.0
  %268 = vmatpush1.msra.mxu0 %v216
  %269 = vmatprep.subr.mxu0 0.0
  %270 = vmatpush1.msra.mxu0 %v217
  %271 = vmatprep.subr.mxu0 0.0
  %272 = vmatpush1.msra.mxu0 %v218
  %273 = vmatprep.subr.mxu0 0.0
  %274 = vmatpush1.msra.mxu0 %v219
  %275 = vmatprep.subr.mxu0 0.0
  %276 = vmatpush1.msra.mxu0 %v220
  %277 = vmatprep.subr.mxu0 0.0
  %278 = vmatpush1.msra.mxu0 %v221
  %279 = vmatprep.subr.mxu0 0.0
  %280 = vmatpush1.msra.mxu0 0.0
  %281 = vmatprep.subr.mxu0 0.0
  %282 = vmatpush1.msra.mxu0 0.0
  %283 = vmatprep.subr.mxu0 0.0
  %284 = vmatpush1.msra.mxu0 0.0
  %285 = vmatprep.subr.mxu0 0.0
  %286 = vmatpush1.msra.mxu0 0.0
  %287 = vmatprep.subr.mxu0 0.0
  %288 = vmatpush1.msra.mxu0 0.0
  %289 = vmatprep.subr.mxu0 0.0
  %290 = vmatpush1.msra.mxu0 0.0
  %291 = vmatprep.subr.mxu0 0.0
  %292 = vmatpush1.msra.mxu0 0.0
  %293 = vmatprep.subr.mxu0 0.0
  %294 = vmatpush1.msra.mxu0 0.0
  %295 = vmatprep.subr.mxu0 0.0
  %296 = vmatpush1.msra.mxu0 0.0
  %297 = vmatprep.subr.mxu0 0.0
  %298 = vmatpush1.msra.mxu0 0.0
  %299 = vmatprep.subr.mxu0 0.0
  %300 = vmatpush1.msra.mxu0 0.0
  %301 = vmatprep.subr.mxu0 0.0
  %302 = vmatpush1.msra.mxu0 0.0
  %303 = vmatprep.subr.mxu0 0.0
  %304 = vmatpush1.msra.mxu0 0.0
  %305 = vmatprep.subr.mxu0 0.0
  %306 = vmatpush1.msra.mxu0 0.0
  %307 = vmatprep.subr.mxu0 0.0
  %308 = vmatpush1.msra.mxu0 0.0
  %309 = vmatprep.subr.mxu0 0.0
  %310 = vmatpush1.msra.mxu0 0.0
  %311 = vmatprep.subr.mxu0 0.0
  %312 = vmatpush1.msra.mxu0 0.0
  %313 = vmatprep.subr.mxu0 0.0
  %314 = vmatpush1.msra.mxu0 0.0
  %315 = vmatprep.subr.mxu0 0.0
  %316 = vmatpush1.msra.mxu0 0.0
  %317 = vmatprep.subr.mxu0 0.0
  %318 = vmatpush1.msra.mxu0 0.0
  %319 = vmatprep.subr.mxu0 0.0
  %320 = vmatpush1.msra.mxu0 0.0
  %321 = vmatprep.subr.mxu0 0.0
  %322 = vmatpush1.msra.mxu0 0.0
  %323 = vmatprep.subr.mxu0 0.0
  %324 = vmatpush1.msra.mxu0 0.0
  %325 = vmatprep.subr.mxu0 0.0
  %326 = vmatpush1.msra.mxu0 0.0
  %327 = vmatprep.mubr.f32.mxu0 0.0
  %328 = vmatmul.mubr.f32.gmra.mrb[0].mxu0 %v252
  %v329 = vpop.f32.mrb[0].mxu0
  %v330 = vadd.f32 %v233, %v329
  %v331 = vpop.f32.mrb[0].mxu0
  %332 = vmatprep.mubr.f32.mxu0 0.0
  %333 = vmatmul.mubr.f32.gmra.mrb[0].mxu0 %v255
  %v334 = vpop.f32.mrb[0].mxu0
  %v335 = vadd.f32 %v238, %v334
  %v336 = vpop.f32.mrb[0].mxu0
  %337 = vmatprep.mubr.f32.mxu0 0.0
  %338 = vmatmul.mubr.f32.gmra.mrb[0].mxu0 %v258
  %v339 = vpop.f32.mrb[0].mxu0
  %v340 = vadd.f32 %v243, %v339
  %v341 = vpop.f32.mrb[0].mxu0
  %342 = vmatprep.mubr.f32.mxu0 0.0
  %343 = vmatmul.mubr.f32.gmra.mrb[0].mxu0 %v261
  %v344 = vpop.f32.mrb[0].mxu0
  %v345 = vadd.f32 %v248, %v344
  %v346 = vpop.f32.mrb[0].mxu0
  %347 = vdwg.mxu0
  %v348 = vmax.f32 %v330, 0.0
  %v349 = vmax.f32 %v335, 0.0
  %v350 = vmax.f32 %v340, 0.0
  %v351 = vmax.f32 %v345, 0.0
  %v352 = vld [vmem:[%s5] sm:$0xff]
  %v353 = vld [vmem:[%s5 + $0x8] sm:$0xff]
  %v354 = vld [vmem:[%s5 + $0x10] sm:$0xff]
  %v355 = vld [vmem:[%s5 + $0x18] sm:$0xff]
  %357 = vset.pattern.permute.xlu0 0
  %358 = vperm.xlu0 %357, %v352
  %v359 = vpop.permute.xlu0 %358
  %362 = vset.pattern.permute.xlu0 0
  %363 = vperm.xlu0 %362, %v353
  %v364 = vpop.permute.xlu0 %363
  %367 = vset.pattern.permute.xlu0 0
  %368 = vperm.xlu0 %367, %v354
  %v369 = vpop.permute.xlu0 %368
  %372 = vset.pattern.permute.xlu0 0
  %373 = vperm.xlu0 %372, %v355
  %v374 = vpop.permute.xlu0 %373
  %v376 = vmul.f32 %v359, %v348
  %v377 = vmul.f32 %v364, %v349
  %v378 = vmul.f32 %v369, %v350
  %v379 = vmul.f32 %v374, %v351
  %v380 = vadd.f32 %v376, %v377
  %v381 = vadd.f32 %v380, %v378
  %v382 = vadd.f32 %v381, %v379
  %v383 = vrot.slane %v382, 4
  %v384 = vadd.f32 %v382, %v383
  %v385 = vrot.slane %v384, 2
  %v386 = vadd.f32 %v384, %v385
  %v387 = vrot.slane %v386, 1
  %v388 = vadd.f32 %v386, %v387
  %s389 = sld [smem:[#allocation2]]
  %v390 = vstv %s389
  %v391 = vadd.f32 %v388, %v390
  %392 = vst [vmem:[%s7] sm:$0x1] %v391
  // Predicated region
  $region30: #{_forward_impl.1} parent=0 // pred_check
    _
  $region31: #{_forward_impl.1} parent=0 // pred_check_branch
    %394 = sbr.rel (0) target = $region33
  $region32: #{_forward_impl.1} parent=0 // pred_region
    _
  $region33: #{_forward_impl.1} parent=0 // pred_fallthru
    _
  // Predicated region
  $region34: #{_forward_impl.1} parent=0 // pred_check
    _
  $region35: #{_forward_impl.1} parent=0 // pred_check_branch
    %396 = sbr.rel (0) target = $region37
  $region36: #{_forward_impl.1} parent=0 // pred_region
    _
  $region37: #{_forward_impl.1} parent=0 // pred_fallthru
    _

</llo_original>
